<compile_context>
chip_gen: v5e
topology: v5e:2x2
jax: 0.10.0
libtpu: 0.0.40
codegen_flags: <defaults>
</compile_context>

<pallas_src>
import jax
import jax.numpy as jnp
from jax.experimental import pallas as pl
from jax.experimental.pallas import tpu as pltpu


def _round_up(x: int, m: int) -> int:
    return ((x + m - 1) // m) * m


def _cdiv(a: int, b: int) -> int:
    return -(-a // b)


def qnet_kernel(x_ref, w1_ref, b1_ref, w2_ref, b2_ref, o_ref):
    # Fused: (x @ W1 + b1) -> ReLU -> (@ W2 + b2), everything VMEM-resident.
    x = x_ref[...].astype(jnp.float32)                       # (tb, in)
    h = jnp.dot(x, w1_ref[...],
                preferred_element_type=jnp.float32) + b1_ref[...]
    h = jnp.maximum(h, 0.0)                                  # ReLU on VPU
    y = jnp.dot(h, w2_ref[...],
                preferred_element_type=jnp.float32) + b2_ref[...]
    o_ref[...] = y.astype(o_ref.dtype)                       # (tb, out) — no lane padding


def prepare_params(w1, b1, w2, b2):
    """One-time parameter prep (hoisted out of the forward path).

    w1: (in, hid), b1: (hid,), w2: (hid, out), b2: (out,).
    Hidden dim is lane-padded to 128 (zero padding is mathematically inert);
    the output dim is left at its real width so the kernel writes only real
    columns. Everything is stored f32.
    """
    LANE = 128
    in_size, hid = w1.shape
    out = w2.shape[1]
    hid_p = _round_up(hid, LANE)

    w1p = jnp.zeros((in_size, hid_p), jnp.float32).at[:, :hid].set(
        w1.astype(jnp.float32))
    b1p = jnp.zeros((1, hid_p), jnp.float32).at[:, :hid].set(
        jnp.reshape(b1, (1, hid)).astype(jnp.float32))
    w2p = jnp.zeros((hid_p, out), jnp.float32).at[:hid, :].set(
        w2.astype(jnp.float32))
    b2p = jnp.reshape(b2, (1, out)).astype(jnp.float32)
    return {"w1": w1p, "b1": b1p, "w2": w2p, "b2": b2p,
            "in_size": in_size, "hid": hid, "out": out}


def linear_qnet_forward(x, params, *, block_batch=2048, min_pallas_batch=128):
    """x: (B, in). params: output of prepare_params()."""
    w1p, b1p, w2p, b2p = params["w1"], params["b1"], params["w2"], params["b2"]
    B, in_size = x.shape
    out = params["out"]
    assert in_size == params["in_size"]

    # Small-batch fallback: pallas launch + batch-pad would dominate here.
    if B < min_pallas_batch:
        h = jnp.maximum(x.astype(jnp.float32) @ w1p + b1p, 0.0)
        return (h @ w2p + b2p).astype(x.dtype)

    # Adaptive batch tiling: waste at most ~one sublane group of padding,
    # and give the grid >= 2 steps for B >= 256 so both v7x TCs get work.
    n_tiles = max(1, _cdiv(B, block_batch))
    if B >= 256:
        n_tiles = max(n_tiles, 2)
    tb = _round_up(_cdiv(B, n_tiles), 16)
    B_p = n_tiles * tb

    xp = x if B_p == B else jnp.pad(x, ((0, B_p - B), (0, 0)))

    hid_p = w1p.shape[1]
    flops = 2 * B_p * (in_size * hid_p + hid_p * out)
    bytes_accessed = (B_p * in_size * xp.dtype.itemsize
                      + w1p.size * 4 + b1p.size * 4
                      + w2p.size * 4 + b2p.size * 4
                      + B_p * out * 4)

    y = pl.pallas_call(
        qnet_kernel,
        out_shape=jax.ShapeDtypeStruct((B_p, out), jnp.float32),
        grid=(n_tiles,),
        in_specs=[
            pl.BlockSpec((tb, in_size), lambda i: (i, 0)),    # x: tiled over batch
            pl.BlockSpec((in_size, hid_p), lambda i: (0, 0)),  # w1: VMEM-resident
            pl.BlockSpec((1, hid_p), lambda i: (0, 0)),        # b1
            pl.BlockSpec((hid_p, out), lambda i: (0, 0)),      # w2
            pl.BlockSpec((1, out), lambda i: (0, 0)),          # b2
        ],
        out_specs=pl.BlockSpec((tb, out), lambda i: (i, 0)),   # real columns only
        compiler_params=pltpu.CompilerParams(
            dimension_semantics=("parallel",)),
        cost_estimate=pl.CostEstimate(flops=flops, transcendentals=0,
                                      bytes_accessed=bytes_accessed),
    )(xp, w1p, b1p, w2p, b2p)

    return y[:B, :].astype(x.dtype)


def init_params(key, input_size, hidden_size, output_size):
    # Matches torch nn.Linear init: uniform(-1/sqrt(fan_in), +1/sqrt(fan_in)).
    # Weights stored transposed vs torch, i.e. (in, out), so forward is x @ W + b.
    k1, k2, k3, k4 = jax.random.split(key, 4)
    bound1 = 1.0 / (input_size ** 0.5)
    bound2 = 1.0 / (hidden_size ** 0.5)
    w1 = jax.random.uniform(k1, (input_size, hidden_size), jnp.float32, -bound1, bound1)
    b1 = jax.random.uniform(k2, (hidden_size,), jnp.float32, -bound1, bound1)
    w2 = jax.random.uniform(k3, (hidden_size, output_size), jnp.float32, -bound2, bound2)
    b2 = jax.random.uniform(k4, (output_size,), jnp.float32, -bound2, bound2)
    return w1, b1, w2, b2
    # TODO(synk): Linear_QNET.save() (torch.save to ./model) is host-side file
    # I/O with no Pallas equivalent; omitted.


if __name__ == "__main__":
    input_size, hidden_size, output_size = 16, 32, 4

    key = jax.random.PRNGKey(0)
    kx, kp, kx2 = jax.random.split(key, 3)
    w1, b1, w2, b2 = init_params(kp, input_size, hidden_size, output_size)
    params = prepare_params(w1, b1, w2, b2)

    def ref_fwd(xa):
        return jnp.maximum(xa @ w1 + b1, 0.0) @ w2 + b2

    TOL = 2e-2  # f32 MXU passes vs default-precision jnp reference

    # Small batch, forced through the Pallas path (single grid step).
    batch = 8
    x = jax.random.normal(kx, (batch, input_size), jnp.float32)
    out = jax.block_until_ready(
        linear_qnet_forward(x, params, min_pallas_batch=0))
    assert out.shape == (batch, output_size)
    assert jnp.allclose(out, ref_fwd(x), atol=TOL, rtol=TOL)

    # Small batch via the jnp fallback (default threshold).
    out_fb = jax.block_until_ready(linear_qnet_forward(x, params))
    assert jnp.allclose(out_fb, ref_fwd(x), atol=TOL, rtol=TOL)

    # Larger batch exercises the multi-tile batch grid (2 x 256-row tiles).
    batch2 = 512
    x2 = jax.random.normal(kx2, (batch2, input_size), jnp.float32)
    out2 = jax.block_until_ready(linear_qnet_forward(x2, params))
    assert out2.shape == (batch2, output_size)
    assert jnp.allclose(out2, ref_fwd(x2), atol=TOL, rtol=TOL)

    print("KERNEL_OK")
</pallas_src>

<mosaic_0001>
module attributes {stable_mosaic.version = 11 : i64} {
  func.func @qnet_kernel(%arg0: i32, %arg1: memref<16x16xf32, #tpu.memory_space<vmem>>, %arg2: memref<16x128xf32, #tpu.memory_space<vmem>>, %arg3: memref<1x128xf32, #tpu.memory_space<vmem>>, %arg4: memref<128x4xf32, #tpu.memory_space<vmem>>, %arg5: memref<1x4xf32, #tpu.memory_space<vmem>>, %arg6: memref<16x4xf32, #tpu.memory_space<vmem>>) attributes {dimension_semantics = [#tpu.dimension_semantics<parallel>], iteration_bounds = array<i64: 1>, scalar_prefetch = 0 : i64, scratch_operands = 0 : i64, tpu.core_type = #tpu.core_type<tc>, window_params = [{transform_indices = @transform_0, window_bounds = array<i64: 16, 16>}, {pipeline_mode = #tpu.pipeline_mode<synchronous>, transform_indices = @transform_1, window_bounds = array<i64: 16, 128>}, {pipeline_mode = #tpu.pipeline_mode<synchronous>, transform_indices = @transform_2, window_bounds = array<i64: 1, 128>}, {pipeline_mode = #tpu.pipeline_mode<synchronous>, transform_indices = @transform_3, window_bounds = array<i64: 128, 4>}, {pipeline_mode = #tpu.pipeline_mode<synchronous>, transform_indices = @transform_4, window_bounds = array<i64: 1, 4>}, {transform_indices = @transform_5, window_bounds = array<i64: 16, 4>}]} {
    %c0 = arith.constant 0 : index
    %c0_0 = arith.constant 0 : index
    %0 = vector.load %arg1[%c0, %c0_0] : memref<16x16xf32, #tpu.memory_space<vmem>>, vector<16x16xf32>
    %c0_1 = arith.constant 0 : index
    %c0_2 = arith.constant 0 : index
    %1 = vector.load %arg2[%c0_1, %c0_2] : memref<16x128xf32, #tpu.memory_space<vmem>>, vector<16x128xf32>
    %cst = arith.constant dense<0.000000e+00> : vector<16x128xf32>
    %2 = tpu.matmul %0, %1, %cst {dimension_numbers = #tpu.dot_dimension_numbers<[1], [0], [0], [1], [0, 0, 1, 1], [], []>} : vector<16x16xf32>, vector<16x128xf32>, vector<16x128xf32> -> vector<16x128xf32>
    %c0_3 = arith.constant 0 : index
    %c0_4 = arith.constant 0 : index
    %3 = vector.load %arg3[%c0_3, %c0_4] : memref<1x128xf32, #tpu.memory_space<vmem>>, vector<1x128xf32>
    %4 = vector.broadcast %3 : vector<1x128xf32> to vector<16x128xf32>
    %5 = arith.addf %2, %4 : vector<16x128xf32>
    %cst_5 = arith.constant 0.000000e+00 : f32
    %6 = vector.broadcast %cst_5 : f32 to vector<16x128xf32>
    %7 = arith.maximumf %5, %6 : vector<16x128xf32>
    %c0_6 = arith.constant 0 : index
    %c0_7 = arith.constant 0 : index
    %8 = vector.load %arg4[%c0_6, %c0_7] : memref<128x4xf32, #tpu.memory_space<vmem>>, vector<128x4xf32>
    %cst_8 = arith.constant dense<0.000000e+00> : vector<16x4xf32>
    %9 = tpu.matmul %7, %8, %cst_8 {dimension_numbers = #tpu.dot_dimension_numbers<[1], [0], [0], [1], [0, 0, 1, 1], [], []>} : vector<16x128xf32>, vector<128x4xf32>, vector<16x4xf32> -> vector<16x4xf32>
    %c0_9 = arith.constant 0 : index
    %c0_10 = arith.constant 0 : index
    %10 = vector.load %arg5[%c0_9, %c0_10] : memref<1x4xf32, #tpu.memory_space<vmem>>, vector<1x4xf32>
    %11 = vector.broadcast %10 : vector<1x4xf32> to vector<16x4xf32>
    %12 = arith.addf %9, %11 : vector<16x4xf32>
    %c0_11 = arith.constant 0 : index
    %c0_12 = arith.constant 0 : index
    %13 = vector.load %arg6[%c0_11, %c0_12] : memref<16x4xf32, #tpu.memory_space<vmem>>, vector<16x4xf32>
    tpu.vector_store %arg6[%c0_11, %c0_12], %12 {strides = array<i32>} : memref<16x4xf32, #tpu.memory_space<vmem>>, vector<16x4xf32>,
    return
  }
  func.func @transform_0(%arg0: i32) -> (i32, i32) {
    %c0_i32 = arith.constant 0 : i32
    %c0_i32_0 = arith.constant 0 : i32
    return %arg0, %c0_i32 : i32, i32
  }
  func.func @transform_1(%arg0: i32) -> (i32, i32) {
    %c0_i32 = arith.constant 0 : i32
    %c0_i32_0 = arith.constant 0 : i32
    %c0_i32_1 = arith.constant 0 : i32
    return %c0_i32, %c0_i32_0 : i32, i32
  }
  func.func @transform_2(%arg0: i32) -> (i32, i32) {
    %c0_i32 = arith.constant 0 : i32
    %c0_i32_0 = arith.constant 0 : i32
    %c0_i32_1 = arith.constant 0 : i32
    return %c0_i32, %c0_i32_0 : i32, i32
  }
  func.func @transform_3(%arg0: i32) -> (i32, i32) {
    %c0_i32 = arith.constant 0 : i32
    %c0_i32_0 = arith.constant 0 : i32
    %c0_i32_1 = arith.constant 0 : i32
    return %c0_i32, %c0_i32_0 : i32, i32
  }
  func.func @transform_4(%arg0: i32) -> (i32, i32) {
    %c0_i32 = arith.constant 0 : i32
    %c0_i32_0 = arith.constant 0 : i32
    %c0_i32_1 = arith.constant 0 : i32
    return %c0_i32, %c0_i32_0 : i32, i32
  }
  func.func @transform_5(%arg0: i32) -> (i32, i32) {
    %c0_i32 = arith.constant 0 : i32
    %c0_i32_0 = arith.constant 0 : i32
    return %arg0, %c0_i32 : i32, i32
  }
}

</mosaic_0001>

<llo_original>
// kernel: tpu_custom_call.1
$region0: #{tpu_custom_call.1}
  #allocation0 [shape = 'u32[]', space=smem, size = 0x4, offset = 0x4, fixed_abs, tag = 'smem constant byte address 0x4 - core index']
  #allocation1 [shape = 'u32[72,128]{1,0:T(1,128)}', space=vmem, size = 0x9000, scoped, tag = 'internal scratch']
  %s0 = inlined_call_operand.vmem [shape: f32[16,16], index: 0, kind: input, shape index: {}]
  %s1 = inlined_call_operand.vmem [shape: f32[16,128], index: 1, kind: input, shape index: {}]
  %s2 = inlined_call_operand.vmem [shape: f32[1,128], index: 2, kind: input, shape index: {}]
  %s3 = inlined_call_operand.vmem [shape: f32[128,4], index: 3, kind: input, shape index: {}]
  %s4 = inlined_call_operand.vmem [shape: f32[1,4], index: 4, kind: input, shape index: {}]
  %s5 = inlined_call_operand.vmem [shape: f32[16,4], index: 5, kind: output, shape index: {}]
  %s6 = sld [smem:[#allocation0]]
  $region30: #{tpu_custom_call.1} parent=0
    _
  %s8 = ssub.s32 1, %s6
  %s9 = scalar_select 0, %s8, %s6
  // Predicated region
  $region2: #{tpu_custom_call.1} parent=0 // pred_check
    _
  $region3: #{tpu_custom_call.1} parent=0 // pred_check_branch
    %11 = sbr.rel (0) target = $region5
  $region4: #{tpu_custom_call.1} parent=0 // pred_region
    _
  $region5: #{tpu_custom_call.1} parent=0 // pred_fallthru
    _
  // Predicated region
  $region6: #{tpu_custom_call.1} parent=0 // pred_check
    _
  $region7: #{tpu_custom_call.1} parent=0 // pred_check_branch
    %13 = sbr.rel (0) target = $region9
  $region8: #{tpu_custom_call.1} parent=0 // pred_region
    _
  $region9: #{tpu_custom_call.1} parent=0 // pred_fallthru
    _
  // Predicated region
  $region10: #{tpu_custom_call.1} parent=0 // pred_check
    _
  $region11: #{tpu_custom_call.1} parent=0 // pred_check_branch
    %15 = sbr.rel (0) target = $region13
  $region12: #{tpu_custom_call.1} parent=0 // pred_region
    _
  $region13: #{tpu_custom_call.1} parent=0 // pred_fallthru
    _
  // Predicated region
  $region14: #{tpu_custom_call.1} parent=0 // pred_check
    _
  $region15: #{tpu_custom_call.1} parent=0 // pred_check_branch
    %17 = sbr.rel (0) target = $region17
  $region16: #{tpu_custom_call.1} parent=0 // pred_region
    _
  $region17: #{tpu_custom_call.1} parent=0 // pred_fallthru
    _
  // Predicated region
  $region18: #{tpu_custom_call.1} parent=0 // pred_check
    _
  $region19: #{tpu_custom_call.1} parent=0 // pred_check_branch
    %19 = sbr.rel (0) target = $region21
  $region20: #{tpu_custom_call.1} parent=0 // pred_region
    _
  $region21: #{tpu_custom_call.1} parent=0 // pred_fallthru
    _
  %v20 = vld [vmem:[%s0] sm:$0xff]
  %v21 = vld [vmem:[%s0 + $0x8] sm:$0xff]
  %v22 = vld [vmem:[%s1] sm:$0xff]
  %v23 = vld [vmem:[%s1 + $0x8] sm:$0xff]
  %v24 = vld [vmem:[%s2] sm:$0x1]
  %v26 = vperm.slane %v24, 0
  %vm28 = vcmask 130048
  %v30 = vsel %vm28, %v20, 0
  %v33 = vsel %vm28, %v21, 0
  %35 = vmatpush.msra.mxu0 0.0
  %36 = vmatpush.msra.mxu0 0.0
  %37 = vmatpush.msra.mxu0 0.0
  %38 = vmatpush.msra.mxu0 0.0
  %39 = vmatpush.msra.mxu0 0.0
  %40 = vmatpush.msra.mxu0 0.0
  %41 = vmatpush.msra.mxu0 0.0
  %42 = vmatpush.msra.mxu0 0.0
  %43 = vmatpush.msra.mxu0 0.0
  %44 = vmatpush.msra.mxu0 0.0
  %45 = vmatpush.msra.mxu0 0.0
  %46 = vmatpush.msra.mxu0 0.0
  %47 = vmatpush.msra.mxu0 0.0
  %48 = vmatpush.msra.mxu0 0.0
  %49 = vmatpush.msra.mxu0 %v23
  %50 = vmatpush.msra.mxu0 %v22
  %51 = vmatmul.f32.gmra.mxu0 %v30
  %v52 = vpop.f32.mrf.mxu0
  %v53 = vadd.f32 %v26, %v52
  %54 = vmatmul.f32.gmra.mxu0 %v33
  %v55 = vpop.f32.mrf.mxu0
  %v56 = vadd.f32 %v26, %v55
  %57 = vdwg.mxu0
  %v58 = vmax.f32 %v53, 0.0
  %v59 = vmax.f32 %v56, 0.0
  %v60 = vld [vmem:[%s3] sm:$0xff]
  %v61 = vld [vmem:[%s3 + $0x8] sm:$0xff]
  %v62 = vld [vmem:[%s3 + $0x10] sm:$0xff]
  %v63 = vld [vmem:[%s3 + $0x18] sm:$0xff]
  %v64 = vld [vmem:[%s3 + $0x20] sm:$0xff]
  %v65 = vld [vmem:[%s3 + $0x28] sm:$0xff]
  %v66 = vld [vmem:[%s3 + $0x30] sm:$0xff]
  %v67 = vld [vmem:[%s3 + $0x38] sm:$0xff]
  %v68 = vld [vmem:[%s3 + $0x40] sm:$0xff]
  %v69 = vld [vmem:[%s3 + $0x48] sm:$0xff]
  %v70 = vld [vmem:[%s3 + $0x50] sm:$0xff]
  %v71 = vld [vmem:[%s3 + $0x58] sm:$0xff]
  %v72 = vld [vmem:[%s3 + $0x60] sm:$0xff]
  %v73 = vld [vmem:[%s3 + $0x68] sm:$0xff]
  %v74 = vld [vmem:[%s3 + $0x70] sm:$0xff]
  %v75 = vld [vmem:[%s3 + $0x78] sm:$0xff]
  %v76 = vld [vmem:[%s4] sm:$0x1]
  %v78 = vperm.slane %v76, 0
  %80 = vmatpush.msra.mxu0 %v75
  %81 = vmatpush.msra.mxu0 %v74
  %82 = vmatpush.msra.mxu0 %v73
  %83 = vmatpush.msra.mxu0 %v72
  %84 = vmatpush.msra.mxu0 %v71
  %85 = vmatpush.msra.mxu0 %v70
  %86 = vmatpush.msra.mxu0 %v69
  %87 = vmatpush.msra.mxu0 %v68
  %88 = vmatpush.msra.mxu0 %v67
  %89 = vmatpush.msra.mxu0 %v66
  %90 = vmatpush.msra.mxu0 %v65
  %91 = vmatpush.msra.mxu0 %v64
  %92 = vmatpush.msra.mxu0 %v63
  %93 = vmatpush.msra.mxu0 %v62
  %94 = vmatpush.msra.mxu0 %v61
  %95 = vmatpush.msra.mxu0 %v60
  %96 = vmatmul.f32.gmra.mxu0 %v58
  %v97 = vpop.f32.mrf.mxu0
  %v98 = vadd.f32 %v78, %v97
  %99 = vmatmul.f32.gmra.mxu0 %v59
  %v100 = vpop.f32.mrf.mxu0
  %v101 = vadd.f32 %v78, %v100
  %102 = vdwg.mxu0
  %vm103 = vcmask 31744
  %104 = vst.msk [vmem:[%s5] sm:$0xff] %vm103, %v98
  %105 = vst.msk [vmem:[%s5 + $0x8] sm:$0xff] %vm103, %v101
  // Predicated region
  $region22: #{tpu_custom_call.1} parent=0 // pred_check
    _
  $region23: #{tpu_custom_call.1} parent=0 // pred_check_branch
    %107 = sbr.rel (0) target = $region25
  $region24: #{tpu_custom_call.1} parent=0 // pred_region
    _
  $region25: #{tpu_custom_call.1} parent=0 // pred_fallthru
    _
  // Predicated region
  $region26: #{tpu_custom_call.1} parent=0 // pred_check
    _
  $region27: #{tpu_custom_call.1} parent=0 // pred_check_branch
    %109 = sbr.rel (0) target = $region29
  $region28: #{tpu_custom_call.1} parent=0 // pred_region
    _
  $region29: #{tpu_custom_call.1} parent=0 // pred_fallthru
    _

</llo_original>
